<compile_context>
chip_gen: v5e
topology: v5e:2x2
jax: 0.10.0
libtpu: 0.0.40
codegen_flags: <defaults>
</compile_context>

<pallas_src>
import jax
import jax.numpy as jnp
from jax.experimental import pallas as pl
from jax.experimental.pallas import tpu as pltpu


def _round_up(x, m):
    return ((x + m - 1) // m) * m


def _critic_kernel(xt_ref, w1t_ref, w2t_ref, aux_ref, o_ref):
    cdt = w1t_ref.dtype  # MXU operand dtype (bf16 default, f32 optional)

    aux = aux_ref[...]          # (H, 4) f32, VMEM-resident
    b1 = aux[:, 0:1]            # (H, 1)
    b2 = aux[:, 1:2]            # (H, 1)
    w3 = aux[:, 2:3]            # (H, 1)  fc3 weight as a column
    b3 = aux[0:1, 3:4]          # (1, 1)  fc3 bias

    xt = xt_ref[...]            # (S_pad, TB) compute dtype, batch in lanes

    # fc1 + ReLU: (H, S_pad) @ (S_pad, TB) on the MXU, f32 accumulation;
    # bias-add / ReLU in f32 (v5e VPU has no bf16 elementwise).
    h1 = jnp.dot(w1t_ref[...], xt, preferred_element_type=jnp.float32) + b1
    h1 = jnp.maximum(h1, 0.0)

    # fc2 + ReLU
    h2 = jnp.dot(w2t_ref[...], h1.astype(cdt), preferred_element_type=jnp.float32) + b2
    h2 = jnp.maximum(h2, 0.0)

    # fc3 (out_features == 1): VPU multiply + sublane reduce -> lane-dense (1, TB) row.
    y = jnp.sum(h2 * w3, axis=0, keepdims=True) + b3
    o_ref[...] = y.astype(o_ref.dtype)


def pack_params(params, compute_dtype=jnp.bfloat16):
    """Transpose & pack Linear params for the feature-major kernel."""
    w1, b1 = params["w1"], params["b1"]     # (S, H), (1, H)
    w2, b2 = params["w2"], params["b2"]     # (H, H), (1, H)
    w3, b3 = params["w3"], params["b3"]     # (H, 1), (1, 1)
    S, H = w1.shape

    S_pad = _round_up(S, 8)                 # keep x^T / W1^T sublane/lane tile aligned
    w1t = w1.T.astype(compute_dtype)        # (H, S)
    if S_pad != S:
        w1t = jnp.pad(w1t, ((0, 0), (0, S_pad - S)))
    w2t = w2.T.astype(compute_dtype)        # (H, H)

    aux = jnp.concatenate(
        [
            b1.reshape(H, 1),
            b2.reshape(H, 1),
            w3.reshape(H, 1),
            jnp.full((H, 1), jnp.reshape(b3, ())),
        ],
        axis=1,
    ).astype(jnp.float32)                   # (H, 4) f32
    return w1t, w2t, aux, S_pad


def critic_forward(x, params, *, block_b=4096, compute_dtype=jnp.bfloat16):
    """x: (B, state_size) float32. Weights stored (in, out): y = x @ W + b."""
    B, S = x.shape
    w1t, w2t, aux, S_pad = pack_params(params, compute_dtype)
    H = w2t.shape[0]
    assert w1t.shape == (H, S_pad) and aux.shape == (H, 4)

    # Batch tile: multiple of 128 (lane dim); big enough to amortize per-step overhead,
    # capped so the grid has >=2 steps when possible (v7x megacore gets both TCs busy).
    b128 = _round_up(B, 128)
    tb = min(block_b, b128)
    if b128 >= 256:
        tb = min(tb, _round_up(b128 // 2, 128))
    tb = max(128, (tb // 128) * 128)
    b_pad = _round_up(b128, tb)

    # Feature-major (batch-in-lanes) activations.  NOTE: ideally the producer would hand
    # us x already transposed/bf16; doing the cast here still halves the kernel's x DMA.
    xT = x.astype(compute_dtype).T                       # (S, B)
    if S_pad != S or b_pad != B:
        xT = jnp.pad(xT, ((0, S_pad - S), (0, b_pad - B)))

    grid = (b_pad // tb,)
    out = pl.pallas_call(
        _critic_kernel,
        out_shape=jax.ShapeDtypeStruct((1, b_pad), jnp.float32),
        grid=grid,
        in_specs=[
            pl.BlockSpec((S_pad, tb), lambda i: (0, i)),   # batch-tiled x^T (lane-dense)
            pl.BlockSpec(w1t.shape, lambda i: (0, 0)),     # resident W1^T
            pl.BlockSpec(w2t.shape, lambda i: (0, 0)),     # resident W2^T
            pl.BlockSpec(aux.shape, lambda i: (0, 0)),     # resident biases + fc3
        ],
        out_specs=pl.BlockSpec((1, tb), lambda i: (0, i)),  # lane-dense output row
        compiler_params=pltpu.CompilerParams(
            dimension_semantics=("parallel",),              # v7x: tiles over 2 TCs
        ),
    )(xT, w1t, w2t, aux)
    return out[0, :B].reshape(B, 1)


def init_params(key, state_size, hidden_size):
    # Deterministic synthetic init (PyTorch-like uniform fan-in bound).
    ks = jax.random.split(key, 6)

    def lin(kw, kb, fan_in, fan_out):
        bound = 1.0 / jnp.sqrt(fan_in)
        w = jax.random.uniform(kw, (fan_in, fan_out), jnp.float32, -bound, bound)
        b = jax.random.uniform(kb, (1, fan_out), jnp.float32, -bound, bound)
        return w, b

    w1, b1 = lin(ks[0], ks[1], state_size, hidden_size)
    w2, b2 = lin(ks[2], ks[3], hidden_size, hidden_size)
    w3, b3 = lin(ks[4], ks[5], hidden_size, 1)
    return {"w1": w1, "b1": b1, "w2": w2, "b2": b2, "w3": w3, "b3": b3}


def critic_reference(x, params, compute_dtype=jnp.float32):
    """Pure-JAX reference; mirrors the kernel's (optional) bf16 rounding points."""
    f32 = jnp.float32
    rnd = lambda a: a.astype(compute_dtype).astype(f32)
    w1, w2 = rnd(params["w1"]), rnd(params["w2"])
    b1, b2 = params["b1"].astype(f32), params["b2"].astype(f32)
    w3 = params["w3"].astype(f32).reshape(1, -1)
    b3 = params["b3"].astype(f32).reshape(1, 1)
    h1 = jnp.maximum(rnd(x) @ w1 + b1, 0.0)
    h2 = jnp.maximum(rnd(h1) @ w2 + b2, 0.0)
    return jnp.sum(h2 * w3, axis=-1, keepdims=True) + b3


if __name__ == "__main__":
    state_size, hidden_size, batch = 16, 32, 8
    key = jax.random.PRNGKey(0)
    kx, kp, kb = jax.random.split(key, 3)
    params = init_params(kp, state_size, hidden_size)

    # --- small f32 check (single grid step; matches the PyTorch module semantics) ---
    x = jax.random.normal(kx, (batch, state_size), jnp.float32)
    out = jax.block_until_ready(critic_forward(x, params, compute_dtype=jnp.float32))
    ref = critic_reference(x, params)
    assert out.shape == (batch, 1)
    assert jnp.allclose(out, ref, atol=1e-4, rtol=1e-4)

    # --- batched path: default bf16 MXU operands, >=2 parallel grid steps ---
    big_batch = 4096
    xb = jax.random.normal(kb, (big_batch, state_size), jnp.float32)
    out_b = jax.block_until_ready(critic_forward(xb, params, block_b=4096))
    ref_b = critic_reference(xb, params, compute_dtype=jnp.bfloat16)
    assert out_b.shape == (big_batch, 1)
    assert jnp.allclose(out_b, ref_b, atol=5e-3, rtol=5e-3)

    print("KERNEL_OK")
</pallas_src>

<mosaic_0001>
module attributes {stable_mosaic.version = 11 : i64} {
  func.func @_critic_kernel(%arg0: i32, %arg1: memref<16x128xf32, #tpu.memory_space<vmem>>, %arg2: memref<32x16xf32, #tpu.memory_space<vmem>>, %arg3: memref<32x32xf32, #tpu.memory_space<vmem>>, %arg4: memref<32x4xf32, #tpu.memory_space<vmem>>, %arg5: memref<1x128xf32, #tpu.memory_space<vmem>>) attributes {dimension_semantics = [#tpu.dimension_semantics<parallel>], iteration_bounds = array<i64: 1>, scalar_prefetch = 0 : i64, scratch_operands = 0 : i64, tpu.core_type = #tpu.core_type<tc>, window_params = [{transform_indices = @transform_0, window_bounds = array<i64: 16, 128>}, {pipeline_mode = #tpu.pipeline_mode<synchronous>, transform_indices = @transform_1, window_bounds = array<i64: 32, 16>}, {pipeline_mode = #tpu.pipeline_mode<synchronous>, transform_indices = @transform_2, window_bounds = array<i64: 32, 32>}, {pipeline_mode = #tpu.pipeline_mode<synchronous>, transform_indices = @transform_3, window_bounds = array<i64: 32, 4>}, {transform_indices = @transform_4, window_bounds = array<i64: 1, 128>}]} {
    %c0 = arith.constant 0 : index
    %c0_0 = arith.constant 0 : index
    %0 = vector.load %arg4[%c0, %c0_0] : memref<32x4xf32, #tpu.memory_space<vmem>>, vector<32x4xf32>
    %1 = vector.extract_strided_slice %0 {offsets = [0, 0], sizes = [32, 1], strides = [1, 1]} : vector<32x4xf32> to vector<32x1xf32>
    %2 = vector.extract_strided_slice %0 {offsets = [0, 1], sizes = [32, 1], strides = [1, 1]} : vector<32x4xf32> to vector<32x1xf32>
    %3 = vector.extract_strided_slice %0 {offsets = [0, 2], sizes = [32, 1], strides = [1, 1]} : vector<32x4xf32> to vector<32x1xf32>
    %4 = vector.extract_strided_slice %0 {offsets = [0, 3], sizes = [1, 1], strides = [1, 1]} : vector<32x4xf32> to vector<1x1xf32>
    %c0_1 = arith.constant 0 : index
    %c0_2 = arith.constant 0 : index
    %5 = vector.load %arg1[%c0_1, %c0_2] : memref<16x128xf32, #tpu.memory_space<vmem>>, vector<16x128xf32>
    %c0_3 = arith.constant 0 : index
    %c0_4 = arith.constant 0 : index
    %6 = vector.load %arg2[%c0_3, %c0_4] : memref<32x16xf32, #tpu.memory_space<vmem>>, vector<32x16xf32>
    %cst = arith.constant dense<0.000000e+00> : vector<32x128xf32>
    %7 = tpu.matmul %6, %5, %cst {dimension_numbers = #tpu.dot_dimension_numbers<[1], [0], [0], [1], [0, 0, 1, 1], [], []>} : vector<32x16xf32>, vector<16x128xf32>, vector<32x128xf32> -> vector<32x128xf32>
    %8 = vector.broadcast %1 : vector<32x1xf32> to vector<32x128xf32>
    %9 = arith.addf %7, %8 : vector<32x128xf32>
    %cst_5 = arith.constant 0.000000e+00 : f32
    %10 = vector.broadcast %cst_5 : f32 to vector<32x128xf32>
    %11 = arith.maximumf %9, %10 : vector<32x128xf32>
    %c0_6 = arith.constant 0 : index
    %c0_7 = arith.constant 0 : index
    %12 = vector.load %arg3[%c0_6, %c0_7] : memref<32x32xf32, #tpu.memory_space<vmem>>, vector<32x32xf32>
    %cst_8 = arith.constant dense<0.000000e+00> : vector<32x128xf32>
    %13 = tpu.matmul %12, %11, %cst_8 {dimension_numbers = #tpu.dot_dimension_numbers<[1], [0], [0], [1], [0, 0, 1, 1], [], []>} : vector<32x32xf32>, vector<32x128xf32>, vector<32x128xf32> -> vector<32x128xf32>
    %14 = vector.broadcast %2 : vector<32x1xf32> to vector<32x128xf32>
    %15 = arith.addf %13, %14 : vector<32x128xf32>
    %cst_9 = arith.constant 0.000000e+00 : f32
    %16 = vector.broadcast %cst_9 : f32 to vector<32x128xf32>
    %17 = arith.maximumf %15, %16 : vector<32x128xf32>
    %18 = vector.broadcast %3 : vector<32x1xf32> to vector<32x128xf32>
    %19 = arith.mulf %17, %18 : vector<32x128xf32>
    %cst_10 = arith.constant dense<0.000000e+00> : vector<128xf32>
    %20 = vector.multi_reduction <add>, %19, %cst_10 [0] : vector<32x128xf32> to vector<128xf32>
    %21 = vector.shape_cast %20 : vector<128xf32> to vector<1x128xf32>
    %22 = vector.broadcast %4 : vector<1x1xf32> to vector<1x128xf32>
    %23 = arith.addf %21, %22 : vector<1x128xf32>
    %c0_11 = arith.constant 0 : index
    %c0_12 = arith.constant 0 : index
    %24 = vector.load %arg5[%c0_11, %c0_12] : memref<1x128xf32, #tpu.memory_space<vmem>>, vector<1x128xf32>
    tpu.vector_store %arg5[%c0_11, %c0_12], %23 {strides = array<i32>} : memref<1x128xf32, #tpu.memory_space<vmem>>, vector<1x128xf32>,
    return
  }
  func.func @transform_0(%arg0: i32) -> (i32, i32) {
    %c0_i32 = arith.constant 0 : i32
    %c0_i32_0 = arith.constant 0 : i32
    return %c0_i32, %arg0 : i32, i32
  }
  func.func @transform_1(%arg0: i32) -> (i32, i32) {
    %c0_i32 = arith.constant 0 : i32
    %c0_i32_0 = arith.constant 0 : i32
    %c0_i32_1 = arith.constant 0 : i32
    return %c0_i32, %c0_i32_0 : i32, i32
  }
  func.func @transform_2(%arg0: i32) -> (i32, i32) {
    %c0_i32 = arith.constant 0 : i32
    %c0_i32_0 = arith.constant 0 : i32
    %c0_i32_1 = arith.constant 0 : i32
    return %c0_i32, %c0_i32_0 : i32, i32
  }
  func.func @transform_3(%arg0: i32) -> (i32, i32) {
    %c0_i32 = arith.constant 0 : i32
    %c0_i32_0 = arith.constant 0 : i32
    %c0_i32_1 = arith.constant 0 : i32
    return %c0_i32, %c0_i32_0 : i32, i32
  }
  func.func @transform_4(%arg0: i32) -> (i32, i32) {
    %c0_i32 = arith.constant 0 : i32
    %c0_i32_0 = arith.constant 0 : i32
    return %c0_i32, %arg0 : i32, i32
  }
}

</mosaic_0001>

<llo_original>
// kernel: tpu_custom_call.1
$region0: #{tpu_custom_call.1}
  #allocation0 [shape = 'u32[]', space=smem, size = 0x4, offset = 0x4, fixed_abs, tag = 'smem constant byte address 0x4 - core index']
  #allocation1 [shape = 'u32[72,128]{1,0:T(1,128)}', space=vmem, size = 0x9000, scoped, tag = 'internal scratch']
  %s0 = inlined_call_operand.vmem [shape: f32[16,128], index: 0, kind: input, shape index: {}]
  %s1 = inlined_call_operand.vmem [shape: f32[32,16], index: 1, kind: input, shape index: {}]
  %s2 = inlined_call_operand.vmem [shape: f32[32,32], index: 2, kind: input, shape index: {}]
  %s3 = inlined_call_operand.vmem [shape: f32[32,4], index: 3, kind: input, shape index: {}]
  %s4 = inlined_call_operand.hbm [shape: f32[1,128], index: 4, kind: output, shape index: {}]
  %s5 = sld [smem:[#allocation0]]
  $region26: #{tpu_custom_call.1} parent=0
    _
  %s7 = ssub.s32 1, %s5
  %s8 = scalar_select 0, %s7, %s5
  $region1: #{tpu_custom_call.1} parent=0
    #allocation2 [shape = 'u8[512]{0}', space=vmem, size = 0x400, scoped, tag = 'output window, operand 0, single buffered']
    #allocation3 [shape = 's32[1]{0}', space=sflag, size = 0x4, scoped, tag = 'scoped memory for tpu_custom_call.1']
    %9 = vsyncpa [#allocation3], 0
    // Predicated region
    $region2: #{tpu_custom_call.1} parent=1 // pred_check
      _
    $region3: #{tpu_custom_call.1} parent=1 // pred_check_branch
      %11 = sbr.rel (0) target = $region5
    $region4: #{tpu_custom_call.1} parent=1 // pred_region
      _
    $region5: #{tpu_custom_call.1} parent=1 // pred_fallthru
      _
    // Predicated region
    $region6: #{tpu_custom_call.1} parent=1 // pred_check
      _
    $region7: #{tpu_custom_call.1} parent=1 // pred_check_branch
      %13 = sbr.rel (0) target = $region9
    $region8: #{tpu_custom_call.1} parent=1 // pred_region
      _
    $region9: #{tpu_custom_call.1} parent=1 // pred_fallthru
      _
    // Predicated region
    $region10: #{tpu_custom_call.1} parent=1 // pred_check
      _
    $region11: #{tpu_custom_call.1} parent=1 // pred_check_branch
      %15 = sbr.rel (0) target = $region13
    $region12: #{tpu_custom_call.1} parent=1 // pred_region
      _
    $region13: #{tpu_custom_call.1} parent=1 // pred_fallthru
      _
    // Predicated region
    $region14: #{tpu_custom_call.1} parent=1 // pred_check
      _
    $region15: #{tpu_custom_call.1} parent=1 // pred_check_branch
      %17 = sbr.rel (0) target = $region17
    $region16: #{tpu_custom_call.1} parent=1 // pred_region
      _
    $region17: #{tpu_custom_call.1} parent=1 // pred_fallthru
      _
    %v18 = vld [vmem:[%s3] sm:$0xff]
    %v19 = vld [vmem:[%s3 + $0x8] sm:$0xff]
    %v20 = vld [vmem:[%s3 + $0x10] sm:$0xff]
    %v21 = vld [vmem:[%s3 + $0x18] sm:$0xff]
    %v22 = vld [vmem:[%s0] sm:$0xff]
    %v23 = vld [vmem:[%s0 + $0x8] sm:$0xff]
    %v24 = vld [vmem:[%s1] sm:$0xff]
    %v25 = vld [vmem:[%s1 + $0x8] sm:$0xff]
    %v26 = vld [vmem:[%s1 + $0x10] sm:$0xff]
    %v27 = vld [vmem:[%s1 + $0x18] sm:$0xff]
    %29 = vset.pattern.permute.xlu0 0
    %30 = vperm.xlu0 %29, %v18
    %v31 = vpop.permute.xlu0 %30
    %34 = vset.pattern.permute.xlu0 0
    %35 = vperm.xlu0 %34, %v19
    %v36 = vpop.permute.xlu0 %35
    %39 = vset.pattern.permute.xlu0 0
    %40 = vperm.xlu0 %39, %v20
    %v41 = vpop.permute.xlu0 %40
    %44 = vset.pattern.permute.xlu0 0
    %45 = vperm.xlu0 %44, %v21
    %v46 = vpop.permute.xlu0 %45
    %vm48 = vcmask 130048
    %v50 = vsel %vm48, %v24, 0
    %v53 = vsel %vm48, %v25, 0
    %v56 = vsel %vm48, %v26, 0
    %v59 = vsel %vm48, %v27, 0
    %61 = vmatpush.msra.mxu0 0.0
    %62 = vmatpush.msra.mxu0 0.0
    %63 = vmatpush.msra.mxu0 0.0
    %64 = vmatpush.msra.mxu0 0.0
    %65 = vmatpush.msra.mxu0 0.0
    %66 = vmatpush.msra.mxu0 0.0
    %67 = vmatpush.msra.mxu0 0.0
    %68 = vmatpush.msra.mxu0 0.0
    %69 = vmatpush.msra.mxu0 0.0
    %70 = vmatpush.msra.mxu0 0.0
    %71 = vmatpush.msra.mxu0 0.0
    %72 = vmatpush.msra.mxu0 0.0
    %73 = vmatpush.msra.mxu0 0.0
    %74 = vmatpush.msra.mxu0 0.0
    %75 = vmatpush.msra.mxu0 %v23
    %76 = vmatpush.msra.mxu0 %v22
    %77 = vmatmul.f32.gmra.mxu0 %v50
    %v78 = vpop.f32.mrf.mxu0
    %v79 = vadd.f32 %v31, %v78
    %80 = vmatmul.f32.gmra.mxu0 %v53
    %v81 = vpop.f32.mrf.mxu0
    %v82 = vadd.f32 %v36, %v81
    %83 = vmatmul.f32.gmra.mxu0 %v56
    %v84 = vpop.f32.mrf.mxu0
    %v85 = vadd.f32 %v41, %v84
    %86 = vmatmul.f32.gmra.mxu0 %v59
    %v87 = vpop.f32.mrf.mxu0
    %v88 = vadd.f32 %v46, %v87
    %89 = vdwg.mxu0
    %v90 = vmax.f32 %v79, 0.0
    %v91 = vmax.f32 %v82, 0.0
    %v92 = vmax.f32 %v85, 0.0
    %v93 = vmax.f32 %v88, 0.0
    %v94 = vld [vmem:[%s2] sm:$0xff]
    %v95 = vld [vmem:[%s2 + $0x8] sm:$0xff]
    %v96 = vld [vmem:[%s2 + $0x10] sm:$0xff]
    %v97 = vld [vmem:[%s2 + $0x18] sm:$0xff]
    %98 = vset.pattern.permute.xlu0 1
    %99 = vperm.xlu0 %98, %v18
    %v100 = vpop.permute.xlu0 %99
    %102 = vset.pattern.permute.xlu0 1
    %103 = vperm.xlu0 %102, %v19
    %v104 = vpop.permute.xlu0 %103
    %106 = vset.pattern.permute.xlu0 1
    %107 = vperm.xlu0 %106, %v20
    %v108 = vpop.permute.xlu0 %107
    %110 = vset.pattern.permute.xlu0 1
    %111 = vperm.xlu0 %110, %v21
    %v112 = vpop.permute.xlu0 %111
    %vm114 = vcmask 261120
    %v116 = vsel %vm114, %v94, 0
    %v119 = vsel %vm114, %v95, 0
    %v122 = vsel %vm114, %v96, 0
    %v125 = vsel %vm114, %v97, 0
    %127 = vmatpush.msra.mxu0 0.0
    %128 = vmatpush.msra.mxu0 0.0
    %129 = vmatpush.msra.mxu0 0.0
    %130 = vmatpush.msra.mxu0 0.0
    %131 = vmatpush.msra.mxu0 0.0
    %132 = vmatpush.msra.mxu0 0.0
    %133 = vmatpush.msra.mxu0 0.0
    %134 = vmatpush.msra.mxu0 0.0
    %135 = vmatpush.msra.mxu0 0.0
    %136 = vmatpush.msra.mxu0 0.0
    %137 = vmatpush.msra.mxu0 0.0
    %138 = vmatpush.msra.mxu0 0.0
    %139 = vmatpush.msra.mxu0 %v93
    %140 = vmatpush.msra.mxu0 %v92
    %141 = vmatpush.msra.mxu0 %v91
    %142 = vmatpush.msra.mxu0 %v90
    %143 = vmatmul.f32.gmra.mxu0 %v116
    %v144 = vpop.f32.mrf.mxu0
    %v145 = vadd.f32 %v100, %v144
    %146 = vmatmul.f32.gmra.mxu0 %v119
    %v147 = vpop.f32.mrf.mxu0
    %v148 = vadd.f32 %v104, %v147
    %149 = vmatmul.f32.gmra.mxu0 %v122
    %v150 = vpop.f32.mrf.mxu0
    %v151 = vadd.f32 %v108, %v150
    %152 = vmatmul.f32.gmra.mxu0 %v125
    %v153 = vpop.f32.mrf.mxu0
    %v154 = vadd.f32 %v112, %v153
    %155 = vdwg.mxu0
    %v156 = vmax.f32 %v145, 0.0
    %v157 = vmax.f32 %v148, 0.0
    %v158 = vmax.f32 %v151, 0.0
    %v159 = vmax.f32 %v154, 0.0
    %160 = vset.pattern.permute.xlu0 2
    %161 = vperm.xlu0 %160, %v18
    %v162 = vpop.permute.xlu0 %161
    %164 = vset.pattern.permute.xlu0 2
    %165 = vperm.xlu0 %164, %v19
    %v166 = vpop.permute.xlu0 %165
    %168 = vset.pattern.permute.xlu0 2
    %169 = vperm.xlu0 %168, %v20
    %v170 = vpop.permute.xlu0 %169
    %172 = vset.pattern.permute.xlu0 2
    %173 = vperm.xlu0 %172, %v21
    %v174 = vpop.permute.xlu0 %173
    %v176 = vmul.f32 %v156, %v162
    %v177 = vmul.f32 %v157, %v166
    %v178 = vmul.f32 %v158, %v170
    %v179 = vmul.f32 %v159, %v174
    %v180 = vadd.f32 %v176, %v177
    %v181 = vadd.f32 %v180, %v178
    %v182 = vadd.f32 %v181, %v179
    %v183 = vrot.slane %v182, 4
    %v184 = vadd.f32 %v182, %v183
    %v185 = vrot.slane %v184, 2
    %v186 = vadd.f32 %v184, %v185
    %v187 = vrot.slane %v186, 1
    %v188 = vadd.f32 %v186, %v187
    %189 = vset.pattern.permute.xlu0 3
    %190 = vperm.xlu0 %189, %v18
    %v191 = vpop.permute.xlu0 %190
    %v193 = vadd.f32 %v188, %v191
    %194 = vst [vmem:[#allocation2] sm:$0x1] %v193
    // Predicated region
    $region18: #{tpu_custom_call.1} parent=1 // pred_check
      _
    $region19: #{tpu_custom_call.1} parent=1 // pred_check_branch
      %196 = sbr.rel (0) target = $region21
    $region20: #{tpu_custom_call.1} parent=1 // pred_region
      %198 = vsyncadd [#allocation3], 0
      %s200 = sshll.u32 [#allocation2], 4
      %s201 = int_to_ptr.vmem [resolvable:$true] %s200
      %s202 = sshll.u32 %s4, 4
      %s203 = int_to_ptr.hbm [resolvable:$true] %s202
      %205 = dma.vmem_to_hbm [thread:$0]  %s201, 16, %s203, [#allocation3]
    $region21: #{tpu_custom_call.1} parent=1 // pred_fallthru
      _
    // Predicated region
    $region22: #{tpu_custom_call.1} parent=1 // pred_check
      _
    $region23: #{tpu_custom_call.1} parent=1 // pred_check_branch
      %207 = sbr.rel (0) target = $region25
    $region24: #{tpu_custom_call.1} parent=1 // pred_region
      %209 = dma.done [#allocation3], 16
    $region25: #{tpu_custom_call.1} parent=1 // pred_fallthru
      _
    %210 = vsyncpa [#allocation3], 1

</llo_original>
